<compile_context>
chip_gen: v7x
topology: tpu7x:2x2x1
jax: 0.10.0
libtpu: 0.0.40
codegen_flags: <defaults>
</compile_context>

<pallas_src>
import functools

import jax
import jax.numpy as jnp
from jax.experimental import pallas as pl
from jax.experimental.pallas import tpu as pltpu


def _dilated_residual_kernel(x_prev_ref, x_cur_ref, x_next_ref, mask_ref,
                             wd_ref, bd_ref, w1_ref, b1_ref, o_ref, ext_ref,
                             *, dilation, block_t):
    # x_*_ref:  (1, C, BLOCK_T)   previous / current / next time tiles of x (NCT)
    # mask_ref: (1, 1, BLOCK_T)   mask[:, 0:1, :] row, lane-dense
    # wd_ref:   (Cout, 3*Cin)     fused dilated-conv weight, [co, k*Cin + ci]
    # bd_ref:   (Cout, 1)         dilated-conv bias (f32)
    # w1_ref:   (Cout, Cout)      1x1-conv weight
    # b1_ref:   (Cout, 1)         1x1-conv bias (f32)
    # o_ref:    (1, Cout, BLOCK_T)
    # ext_ref:  (C, 3*BLOCK_T)    VMEM scratch holding [prev | cur | next]
    d = dilation
    bt = block_t
    t_idx = pl.program_id(1)
    n_t = pl.num_programs(1)

    x_cur = x_cur_ref[0]                                     # (C, BT)
    keep_l = (t_idx > 0).astype(x_cur.dtype)
    keep_r = (t_idx < n_t - 1).astype(x_cur.dtype)

    # Stage [prev | cur | next] along time in VMEM with aligned stores.
    # Neighbour tiles are zeroed at the sequence ends, reproducing Conv1d's
    # zero padding of size `dilation`.
    ext_ref[:, pl.ds(0, bt)] = x_prev_ref[0] * keep_l
    ext_ref[:, pl.ds(bt, bt)] = x_cur
    ext_ref[:, pl.ds(2 * bt, bt)] = x_next_ref[0] * keep_r

    # Three dilated taps stacked along channels -> single MXU matmul
    # (Cout, 3*Cin) @ (3*Cin, BLOCK_T) instead of three tiny-K matmuls.
    x_stack = jnp.concatenate(
        [ext_ref[:, pl.ds(bt - d, bt)],       # tap at t - d
         x_cur,                               # tap at t
         ext_ref[:, pl.ds(bt + d, bt)]],      # tap at t + d
        axis=0)                               # (3*C, BT)

    acc = jnp.dot(wd_ref[...], x_stack,
                  preferred_element_type=jnp.float32) + bd_ref[...]
    h = jnp.maximum(acc, 0.0).astype(w1_ref.dtype)           # ReLU

    out = jnp.dot(w1_ref[...], h,
                  preferred_element_type=jnp.float32) + b1_ref[...]

    # Residual + mask broadcast (mask row broadcasts over channels/sublanes).
    res = (x_cur.astype(jnp.float32) + out) * mask_ref[0].astype(jnp.float32)
    o_ref[0] = res.astype(o_ref.dtype)


def _pick_block_t(T, dilation):
    for cand in (512, 256, 128):
        if T % cand == 0 and dilation <= cand:
            return cand
    return T


@functools.partial(jax.jit, static_argnames=("dilation", "block_t"))
def dilated_residual_layer(x_nct, mask_nct, params, dilation, block_t=None):
    """x_nct: (B, C, T); mask_nct: (B, M, T). params use PyTorch Conv1d layouts:
         wd: (Cout, Cin, 3)  bd: (Cout,)  w1: (Cout, Cout, 1)  b1: (Cout,)
       Returns (B, Cout, T) in x_nct.dtype."""
    wd, bd, w1, b1 = params["wd"], params["bd"], params["w1"], params["b1"]
    B, C, T = x_nct.shape
    c_out, c_in, k = wd.shape
    assert k == 3 and c_in == C and c_out == C, "residual requires Cin == Cout"

    if block_t is None:
        block_t = _pick_block_t(T, dilation)
    assert T % block_t == 0, "T must be a multiple of block_t"
    assert dilation <= block_t, "halo must fit within one neighbouring tile"
    n_t = T // block_t

    # Fused tap-major dilated weight: wd_flat[co, k*Cin + ci] = wd[co, ci, k].
    wd_flat = jnp.transpose(wd, (0, 2, 1)).reshape(c_out, 3 * c_in).astype(x_nct.dtype)
    w1_mat = w1[:, :, 0].astype(x_nct.dtype)                  # (Cout, Cout)
    bd_col = bd.reshape(c_out, 1).astype(jnp.float32)
    b1_col = b1.reshape(c_out, 1).astype(jnp.float32)
    mask_row = mask_nct[:, 0:1, :].astype(x_nct.dtype)        # (B, 1, T), lane-dense

    kernel = functools.partial(_dilated_residual_kernel,
                               dilation=dilation, block_t=block_t)

    x_spec_cur = pl.BlockSpec((1, C, block_t), lambda b, t: (b, 0, t))
    x_spec_prev = pl.BlockSpec((1, C, block_t),
                               lambda b, t: (b, 0, jnp.maximum(t - 1, 0)))
    x_spec_next = pl.BlockSpec((1, C, block_t),
                               lambda b, t: (b, 0, jnp.minimum(t + 1, n_t - 1)))

    out = pl.pallas_call(
        kernel,
        out_shape=jax.ShapeDtypeStruct((B, c_out, T), x_nct.dtype),
        grid_spec=pltpu.PrefetchScalarGridSpec(
            num_scalar_prefetch=0,
            grid=(B, n_t),
            in_specs=[
                x_spec_prev,
                x_spec_cur,
                x_spec_next,
                pl.BlockSpec((1, 1, block_t), lambda b, t: (b, 0, t)),   # mask row
                pl.BlockSpec((c_out, 3 * c_in), lambda b, t: (0, 0)),    # wd_flat
                pl.BlockSpec((c_out, 1), lambda b, t: (0, 0)),           # bd
                pl.BlockSpec((c_out, c_out), lambda b, t: (0, 0)),       # w1
                pl.BlockSpec((c_out, 1), lambda b, t: (0, 0)),           # b1
            ],
            out_specs=pl.BlockSpec((1, c_out, block_t), lambda b, t: (b, 0, t)),
            scratch_shapes=[pltpu.VMEM((C, 3 * block_t), x_nct.dtype)],
        ),
        compiler_params=pltpu.CompilerParams(
            dimension_semantics=("parallel", "parallel")),
    )(x_nct, x_nct, x_nct, mask_row, wd_flat, bd_col, w1_mat, b1_col)
    return out


def _reference(x_nct, mask_nct, params, dilation):
    """Plain-JAX reference using jax.lax.conv_general_dilated (torch layouts)."""
    wd, bd, w1, b1 = params["wd"], params["bd"], params["w1"], params["b1"]
    out = jax.lax.conv_general_dilated(
        x_nct, wd, window_strides=(1,),
        padding=[(dilation, dilation)], rhs_dilation=(dilation,),
        dimension_numbers=("NCH", "OIH", "NCH"))
    out = out + bd.reshape(1, -1, 1)
    out = jnp.maximum(out, 0.0)
    out = jax.lax.conv_general_dilated(
        out, w1, window_strides=(1,), padding=[(0, 0)],
        dimension_numbers=("NCH", "OIH", "NCH"))
    out = out + b1.reshape(1, -1, 1)
    return (x_nct + out) * mask_nct[:, 0:1, :]


if __name__ == "__main__":
    B, C, T = 2, 16, 512
    dilation = 4
    block_t = 256   # two time tiles -> exercises halo exchange and both sequence ends

    key = jax.random.PRNGKey(0)
    k_x, k_m, k_wd, k_bd, k_w1, k_b1 = jax.random.split(key, 6)

    x = jax.random.normal(k_x, (B, C, T), dtype=jnp.float32)
    # mask: binary (B, C, T); the forward only uses mask[:, 0:1, :]
    mask = (jax.random.uniform(k_m, (B, C, T)) > 0.3).astype(jnp.float32)

    # Parameters in PyTorch Conv1d layouts.
    params = {
        "wd": 0.1 * jax.random.normal(k_wd, (C, C, 3), dtype=jnp.float32),
        "bd": 0.1 * jax.random.normal(k_bd, (C,), dtype=jnp.float32),
        "w1": 0.1 * jax.random.normal(k_w1, (C, C, 1), dtype=jnp.float32),
        "b1": 0.1 * jax.random.normal(k_b1, (C,), dtype=jnp.float32),
    }

    out = dilated_residual_layer(x, mask, params, dilation=dilation, block_t=block_t)
    out = jax.block_until_ready(out)

    ref = _reference(x, mask, params, dilation)
    assert out.shape == (B, C, T)
    assert jnp.allclose(out, ref, atol=1e-4, rtol=1e-4), "mismatch vs reference"

    print("KERNEL_OK")
</pallas_src>

<mosaic_0001>
module attributes {stable_mosaic.version = 11 : i64} {
  func.func @_dilated_residual_kernel(%arg0: i32, %arg1: i32, %arg2: memref<1x16x256xf32, #tpu.memory_space<vmem>>, %arg3: memref<1x16x256xf32, #tpu.memory_space<vmem>>, %arg4: memref<1x16x256xf32, #tpu.memory_space<vmem>>, %arg5: memref<1x1x256xf32, #tpu.memory_space<vmem>>, %arg6: memref<16x48xf32, #tpu.memory_space<vmem>>, %arg7: memref<16x1xf32, #tpu.memory_space<vmem>>, %arg8: memref<16x16xf32, #tpu.memory_space<vmem>>, %arg9: memref<16x1xf32, #tpu.memory_space<vmem>>, %arg10: memref<1x16x256xf32, #tpu.memory_space<vmem>>, %arg11: memref<16x768xf32, #tpu.memory_space<vmem>>) attributes {dimension_semantics = [#tpu.dimension_semantics<parallel>, #tpu.dimension_semantics<parallel>], iteration_bounds = array<i64: 2, 2>, scalar_prefetch = 0 : i64, scratch_operands = 1 : i64, tpu.core_type = #tpu.core_type<tc>, window_params = [{transform_indices = @transform_0, window_bounds = array<i64: 1, 16, 256>}, {transform_indices = @transform_1, window_bounds = array<i64: 1, 16, 256>}, {transform_indices = @transform_2, window_bounds = array<i64: 1, 16, 256>}, {transform_indices = @transform_3, window_bounds = array<i64: 1, 1, 256>}, {pipeline_mode = #tpu.pipeline_mode<synchronous>, transform_indices = @transform_4, window_bounds = array<i64: 16, 48>}, {pipeline_mode = #tpu.pipeline_mode<synchronous>, transform_indices = @transform_5, window_bounds = array<i64: 16, 1>}, {pipeline_mode = #tpu.pipeline_mode<synchronous>, transform_indices = @transform_6, window_bounds = array<i64: 16, 16>}, {pipeline_mode = #tpu.pipeline_mode<synchronous>, transform_indices = @transform_7, window_bounds = array<i64: 16, 1>}, {transform_indices = @transform_8, window_bounds = array<i64: 1, 16, 256>}]} {
    %c0 = arith.constant 0 : index
    %c0_0 = arith.constant 0 : index
    %c0_1 = arith.constant 0 : index
    %0 = vector.load %arg3[%c0, %c0_0, %c0_1] : memref<1x16x256xf32, #tpu.memory_space<vmem>>, vector<1x16x256xf32>
    %1 = vector.shape_cast %0 : vector<1x16x256xf32> to vector<16x256xf32>
    %c0_i32 = arith.constant 0 : i32
    %2 = arith.cmpi sgt, %arg1, %c0_i32 : i32
    %3 = arith.extui %2 : i1 to i32
    %4 = arith.sitofp %3 : i32 to f32
    %c1_i32 = arith.constant 1 : i32
    %5 = arith.cmpi slt, %arg1, %c1_i32 : i32
    %6 = arith.extui %5 : i1 to i32
    %7 = arith.sitofp %6 : i32 to f32
    %c0_2 = arith.constant 0 : index
    %c0_3 = arith.constant 0 : index
    %c0_4 = arith.constant 0 : index
    %8 = vector.load %arg2[%c0_2, %c0_3, %c0_4] : memref<1x16x256xf32, #tpu.memory_space<vmem>>, vector<1x16x256xf32>
    %9 = vector.shape_cast %8 : vector<1x16x256xf32> to vector<16x256xf32>
    %10 = vector.broadcast %4 : f32 to vector<16x256xf32>
    %11 = arith.mulf %9, %10 : vector<16x256xf32>
    %c0_5 = arith.constant 0 : index
    %c0_6 = arith.constant 0 : index
    %12 = vector.load %arg11[%c0_5, %c0_6] : memref<16x768xf32, #tpu.memory_space<vmem>>, vector<16x256xf32>
    tpu.vector_store %arg11[%c0_5, %c0_6], %11 {strides = array<i32>} : memref<16x768xf32, #tpu.memory_space<vmem>>, vector<16x256xf32>,
    %c0_7 = arith.constant 0 : index
    %c256 = arith.constant 256 : index
    %13 = vector.load %arg11[%c0_7, %c256] : memref<16x768xf32, #tpu.memory_space<vmem>>, vector<16x256xf32>
    tpu.vector_store %arg11[%c0_7, %c256], %1 {strides = array<i32>} : memref<16x768xf32, #tpu.memory_space<vmem>>, vector<16x256xf32>,
    %c0_8 = arith.constant 0 : index
    %c0_9 = arith.constant 0 : index
    %c0_10 = arith.constant 0 : index
    %14 = vector.load %arg4[%c0_8, %c0_9, %c0_10] : memref<1x16x256xf32, #tpu.memory_space<vmem>>, vector<1x16x256xf32>
    %15 = vector.shape_cast %14 : vector<1x16x256xf32> to vector<16x256xf32>
    %16 = vector.broadcast %7 : f32 to vector<16x256xf32>
    %17 = arith.mulf %15, %16 : vector<16x256xf32>
    %c0_11 = arith.constant 0 : index
    %c512 = arith.constant 512 : index
    %18 = vector.load %arg11[%c0_11, %c512] : memref<16x768xf32, #tpu.memory_space<vmem>>, vector<16x256xf32>
    tpu.vector_store %arg11[%c0_11, %c512], %17 {strides = array<i32>} : memref<16x768xf32, #tpu.memory_space<vmem>>, vector<16x256xf32>,
    %c0_12 = arith.constant 0 : index
    %c252 = arith.constant 252 : index
    %19 = vector.load %arg11[%c0_12, %c252] : memref<16x768xf32, #tpu.memory_space<vmem>>, vector<16x256xf32>
    %c0_13 = arith.constant 0 : index
    %c260 = arith.constant 260 : index
    %20 = vector.load %arg11[%c0_13, %c260] : memref<16x768xf32, #tpu.memory_space<vmem>>, vector<16x256xf32>
    %21 = tpu.concatenate %19, %1, %20 in 0 : vector<16x256xf32>, vector<16x256xf32>, vector<16x256xf32> -> vector<48x256xf32>
    %c0_14 = arith.constant 0 : index
    %c0_15 = arith.constant 0 : index
    %22 = vector.load %arg6[%c0_14, %c0_15] : memref<16x48xf32, #tpu.memory_space<vmem>>, vector<16x48xf32>
    %cst = arith.constant dense<0.000000e+00> : vector<16x256xf32>
    %23 = tpu.matmul %22, %21, %cst {dimension_numbers = #tpu.dot_dimension_numbers<[1], [0], [0], [1], [0, 0, 1, 1], [], []>} : vector<16x48xf32>, vector<48x256xf32>, vector<16x256xf32> -> vector<16x256xf32>
    %c0_16 = arith.constant 0 : index
    %c0_17 = arith.constant 0 : index
    %24 = vector.load %arg7[%c0_16, %c0_17] : memref<16x1xf32, #tpu.memory_space<vmem>>, vector<16x1xf32>
    %25 = vector.broadcast %24 : vector<16x1xf32> to vector<16x256xf32>
    %26 = arith.addf %23, %25 : vector<16x256xf32>
    %cst_18 = arith.constant 0.000000e+00 : f32
    %27 = vector.broadcast %cst_18 : f32 to vector<16x256xf32>
    %28 = arith.maximumf %26, %27 : vector<16x256xf32>
    %c0_19 = arith.constant 0 : index
    %c0_20 = arith.constant 0 : index
    %29 = vector.load %arg8[%c0_19, %c0_20] : memref<16x16xf32, #tpu.memory_space<vmem>>, vector<16x16xf32>
    %cst_21 = arith.constant dense<0.000000e+00> : vector<16x256xf32>
    %30 = tpu.matmul %29, %28, %cst_21 {dimension_numbers = #tpu.dot_dimension_numbers<[1], [0], [0], [1], [0, 0, 1, 1], [], []>} : vector<16x16xf32>, vector<16x256xf32>, vector<16x256xf32> -> vector<16x256xf32>
    %c0_22 = arith.constant 0 : index
    %c0_23 = arith.constant 0 : index
    %31 = vector.load %arg9[%c0_22, %c0_23] : memref<16x1xf32, #tpu.memory_space<vmem>>, vector<16x1xf32>
    %32 = vector.broadcast %31 : vector<16x1xf32> to vector<16x256xf32>
    %33 = arith.addf %30, %32 : vector<16x256xf32>
    %34 = arith.addf %1, %33 : vector<16x256xf32>
    %c0_24 = arith.constant 0 : index
    %c0_25 = arith.constant 0 : index
    %c0_26 = arith.constant 0 : index
    %35 = vector.load %arg5[%c0_24, %c0_25, %c0_26] : memref<1x1x256xf32, #tpu.memory_space<vmem>>, vector<1x1x256xf32>
    %36 = vector.shape_cast %35 : vector<1x1x256xf32> to vector<1x256xf32>
    %37 = vector.broadcast %36 : vector<1x256xf32> to vector<16x256xf32>
    %38 = arith.mulf %34, %37 : vector<16x256xf32>
    %c0_27 = arith.constant 0 : index
    %c0_28 = arith.constant 0 : index
    %c0_29 = arith.constant 0 : index
    %39 = vector.load %arg10[%c0_27, %c0_28, %c0_29] : memref<1x16x256xf32, #tpu.memory_space<vmem>>, vector<1x16x256xf32>
    %40 = vector.shape_cast %39 : vector<1x16x256xf32> to vector<16x256xf32>
    %41 = vector.shape_cast %38 : vector<16x256xf32> to vector<1x16x256xf32>
    tpu.vector_store %arg10[%c0_27, %c0_28, %c0_29], %41 {strides = array<i32>} : memref<1x16x256xf32, #tpu.memory_space<vmem>>, vector<1x16x256xf32>,
    return
  }
  func.func @transform_0(%arg0: i32, %arg1: i32) -> (i32, i32, i32) {
    %c1_i32 = arith.constant 1 : i32
    %0 = arith.subi %arg1, %c1_i32 : i32
    %c0_i32 = arith.constant 0 : i32
    %1 = arith.maxsi %0, %c0_i32 : i32
    %c0_i32_0 = arith.constant 0 : i32
    %c0_i32_1 = arith.constant 0 : i32
    return %arg0, %c0_i32_0, %1 : i32, i32, i32
  }
  func.func @transform_1(%arg0: i32, %arg1: i32) -> (i32, i32, i32) {
    %c0_i32 = arith.constant 0 : i32
    %c0_i32_0 = arith.constant 0 : i32
    return %arg0, %c0_i32, %arg1 : i32, i32, i32
  }
  func.func @transform_2(%arg0: i32, %arg1: i32) -> (i32, i32, i32) {
    %c1_i32 = arith.constant 1 : i32
    %0 = arith.addi %arg1, %c1_i32 : i32
    %c1_i32_0 = arith.constant 1 : i32
    %1 = arith.minsi %0, %c1_i32_0 : i32
    %c0_i32 = arith.constant 0 : i32
    %c0_i32_1 = arith.constant 0 : i32
    return %arg0, %c0_i32, %1 : i32, i32, i32
  }
  func.func @transform_3(%arg0: i32, %arg1: i32) -> (i32, i32, i32) {
    %c0_i32 = arith.constant 0 : i32
    %c0_i32_0 = arith.constant 0 : i32
    return %arg0, %c0_i32, %arg1 : i32, i32, i32
  }
  func.func @transform_4(%arg0: i32, %arg1: i32) -> (i32, i32) {
    %c0_i32 = arith.constant 0 : i32
    %c0_i32_0 = arith.constant 0 : i32
    %c0_i32_1 = arith.constant 0 : i32
    return %c0_i32, %c0_i32_0 : i32, i32
  }
  func.func @transform_5(%arg0: i32, %arg1: i32) -> (i32, i32) {
    %c0_i32 = arith.constant 0 : i32
    %c0_i32_0 = arith.constant 0 : i32
    %c0_i32_1 = arith.constant 0 : i32
    return %c0_i32, %c0_i32_0 : i32, i32
  }
  func.func @transform_6(%arg0: i32, %arg1: i32) -> (i32, i32) {
    %c0_i32 = arith.constant 0 : i32
    %c0_i32_0 = arith.constant 0 : i32
    %c0_i32_1 = arith.constant 0 : i32
    return %c0_i32, %c0_i32_0 : i32, i32
  }
  func.func @transform_7(%arg0: i32, %arg1: i32) -> (i32, i32) {
    %c0_i32 = arith.constant 0 : i32
    %c0_i32_0 = arith.constant 0 : i32
    %c0_i32_1 = arith.constant 0 : i32
    return %c0_i32, %c0_i32_0 : i32, i32
  }
  func.func @transform_8(%arg0: i32, %arg1: i32) -> (i32, i32, i32) {
    %c0_i32 = arith.constant 0 : i32
    %c0_i32_0 = arith.constant 0 : i32
    return %arg0, %c0_i32, %arg1 : i32, i32, i32
  }
}

</mosaic_0001>

<llo_original>
// kernel: dilated_residual_layer.1
$region0: #{dilated_residual_layer.1}
  #allocation0 [shape = 'u32[]', space=smem, size = 0x4, offset = 0x4, fixed_abs, tag = 'smem constant byte address 0x4 - core index']
  #allocation1 [shape = 'u32[144,128]{1,0:T(1,128)}', space=vmem, size = 0x12000, scoped, tag = 'internal scratch']
  #allocation2 [shape = 'f32[16,768]{1,0:T(8,128)}', space=vmem, size = 0xc000, scoped, tag = 'scratch operand']
  %s0 = inlined_call_operand.vmem [shape: f32[2,16,512], index: 0, kind: input, shape index: {}, may-alias: {0,1,2}]
  %s1 = inlined_call_operand.vmem [shape: f32[2,16,512], index: 1, kind: input, shape index: {}, may-alias: {0,1,2}]
  %s2 = inlined_call_operand.vmem [shape: f32[2,16,512], index: 2, kind: input, shape index: {}, may-alias: {0,1,2}]
  %s3 = inlined_call_operand.vmem [shape: f32[2,1,512], index: 3, kind: input, shape index: {}]
  %s4 = inlined_call_operand.vmem [shape: f32[16,48], index: 4, kind: input, shape index: {}]
  %s5 = inlined_call_operand.vmem [shape: f32[16,1], index: 5, kind: input, shape index: {}]
  %s6 = inlined_call_operand.vmem [shape: f32[16,16], index: 6, kind: input, shape index: {}]
  %s7 = inlined_call_operand.vmem [shape: f32[16,1], index: 7, kind: input, shape index: {}]
  %s8 = inlined_call_operand.hbm [shape: f32[2,16,512], index: 8, kind: output, shape index: {}]
  %s9 = sld [smem:[#allocation0]]
  $region134: #{dilated_residual_layer.1} parent=0
    _
  %s11 = ssub.s32 1, %s9
  %s12 = scalar_select 0, %s11, %s9
  $region1: #{dilated_residual_layer.1} parent=0
    #allocation3 [shape = 'u8[32768]{0}', space=vmem, size = 0x8000, scoped, tag = 'input window, operand 0']
    #allocation4 [shape = 'u8[32768]{0}', space=vmem, size = 0x8000, scoped, tag = 'input window, operand 1']
    #allocation5 [shape = 'u8[32768]{0}', space=vmem, size = 0x8000, scoped, tag = 'input window, operand 2']
    #allocation6 [shape = 'u8[32768]{0}', space=vmem, size = 0x8000, scoped, tag = 'output window, operand 0']
    #allocation7 [shape = 's32[2]{0}', space=sflag, size = 0x8, scoped, tag = 'scoped memory for dilated_residual_layer.1']
    %13 = vsyncpa [#allocation7], 0
    %s14 = scalar_lea.sflag [#allocation7], 1
    %15 = vsyncpa %s14, 0
    loop: start=0, step=1, limit=6
    $region2: #{dilated_residual_layer.1} parent=1 // loop_pre_header
      _
    $region3: #{dilated_residual_layer.1} parent=1 // loop_header
      %s17 = sphi 0, %s21
      %p18 = scmp.ge.s32.totalorder %s17, 6
      %s24 = sphi 0, %s36
      %s25 = sphi 0, %s32
      %s26 = sphi 0, %s24
      %s27 = sphi 0, %s25
      %s28 = sphi 0, %s26
      %s29 = sphi 0, %s27
      %s47 = sphi 0, %s49
      %s50 = sphi 0, %s47
      %s51 = sphi 0, %s50
      %s67 = sphi 0, %s51
      %s75 = sphi 0, %s77
      %s78 = sphi 0, %s75
      %s79 = sphi 0, %s78
      %s95 = sphi 0, %s79
      %s109 = sphi 0, %s111
      %s112 = sphi 0, %s109
      %s113 = sphi 0, %s112
      %s129 = sphi 0, %s113
      %s137 = sphi 0, %s139
      %s140 = sphi 0, %s137
      %s141 = sphi 0, %s140
      %s157 = sphi 0, %s141
      %s161 = sphi 0, %s161
      %s163 = sphi 0, %s161
      %s164 = sphi 0, %s163
      %s178 = sphi 0, %s164
      %s182 = sphi 0, %s182
      %s184 = sphi 0, %s182
      %s185 = sphi 0, %s184
      %s199 = sphi 0, %s185
      %s203 = sphi 0, %s203
      %s205 = sphi 0, %s203
      %s206 = sphi 0, %s205
      %s220 = sphi 0, %s206
      %s224 = sphi 0, %s224
      %s226 = sphi 0, %s224
      %s227 = sphi 0, %s226
      %s241 = sphi 0, %s227
      %s249 = sphi 0, %s251
      %s252 = sphi 0, %s249
      %s253 = sphi 0, %s252
      %s269 = sphi 0, %s253
    $region4: #{dilated_residual_layer.1} parent=1 // loop_header_branch
      %20 = sbr.rel (%p18) target = $region8
    $region5: #{dilated_residual_layer.1} parent=1 // loop_body
      %s22 = ssub.s32 %s17, 1
      %s23 = ssub.s32 %s17, 2
      %s30 = sadd.s32 1, %s25
      %p31 = scmp.ge.s32.totalorder %s30, 2
      %s32 = scalar_select %p31, 0, %s30
      %s33 = sadd.s32 1, %s24
      %s34 = scalar_select %p31, %s33, %s24
      %p35 = scmp.ge.s32.totalorder %s34, 2
      %s36 = scalar_select %p35, 0, %s34
      %s37 = ssub.s32 %s25, 1
      %p38 = scmp.gt.s32.totalorder %s37, 0
      %s39 = scalar_select %p38, %s37, 0
      %s40 = ssub.s32 %s32, 1
      %p41 = scmp.gt.s32.totalorder %s40, 0
      %s42 = scalar_select %p41, %s40, 0
      %s43 = ssub.s32 %s24, %s36
      %s44 = ssub.s32 %s39, %s42
      %s45 = sor.u32 %s43, %s44
      %p46 = scmp.eq.s32.totalorder %s45, 0
      %s48 = sadd.s32 %s47, 1
      %s49 = scalar_select %p46, %s47, %s48
      %p52 = pneg %p46
      %p53 = scmp.eq.s32.totalorder %s17, 3
      %p54 = por %p52, %p53
      %p55 = scmp.ne.s32.totalorder %s47, %s50
      %p56 = scmp.eq.s32.totalorder %s17, 0
      %p57 = por %p55, %p56
      %p58 = scmp.ne.s32.totalorder %s47, %s50
      %p59 = scmp.eq.s32.totalorder %s22, 3
      %p60 = por %p58, %p59
      %p61 = scmp.ne.s32.totalorder %s50, %s51
      %p62 = scmp.eq.s32.totalorder %s22, 0
      %p63 = por %p61, %p62
      %p64 = scmp.ne.s32.totalorder %s50, %s51
      %p65 = scmp.eq.s32.totalorder %s23, 3
      %p66 = por %p64, %p65
      %p68 = scmp.ne.s32.totalorder %s51, %s67
      %p69 = scmp.eq.s32.totalorder %s23, 0
      %p70 = por %p68, %p69
      %s71 = ssub.s32 %s24, %s36
      %s72 = ssub.s32 %s25, %s32
      %s73 = sor.u32 %s71, %s72
      %p74 = scmp.eq.s32.totalorder %s73, 0
      %s76 = sadd.s32 %s75, 1
      %s77 = scalar_select %p74, %s75, %s76
      %p80 = pneg %p74
      %p81 = scmp.eq.s32.totalorder %s17, 3
      %p82 = por %p80, %p81
      %p83 = scmp.ne.s32.totalorder %s75, %s78
      %p84 = scmp.eq.s32.totalorder %s17, 0
      %p85 = por %p83, %p84
      %p86 = scmp.ne.s32.totalorder %s75, %s78
      %p87 = scmp.eq.s32.totalorder %s22, 3
      %p88 = por %p86, %p87
      %p89 = scmp.ne.s32.totalorder %s78, %s79
      %p90 = scmp.eq.s32.totalorder %s22, 0
      %p91 = por %p89, %p90
      %p92 = scmp.ne.s32.totalorder %s78, %s79
      %p93 = scmp.eq.s32.totalorder %s23, 3
      %p94 = por %p92, %p93
      %p96 = scmp.ne.s32.totalorder %s79, %s95
      %p97 = scmp.eq.s32.totalorder %s23, 0
      %p98 = por %p96, %p97
      %s99 = sadd.s32 %s25, 1
      %p100 = scmp.lt.s32.totalorder %s99, 1
      %s101 = scalar_select %p100, %s99, 1
      %s102 = sadd.s32 %s32, 1
      %p103 = scmp.lt.s32.totalorder %s102, 1
      %s104 = scalar_select %p103, %s102, 1
      %s105 = ssub.s32 %s24, %s36
      %s106 = ssub.s32 %s101, %s104
      %s107 = sor.u32 %s105, %s106
      %p108 = scmp.eq.s32.totalorder %s107, 0
      %s110 = sadd.s32 %s109, 1
      %s111 = scalar_select %p108, %s109, %s110
      %p114 = pneg %p108
      %p115 = scmp.eq.s32.totalorder %s17, 3
      %p116 = por %p114, %p115
      %p117 = scmp.ne.s32.totalorder %s109, %s112
      %p118 = scmp.eq.s32.totalorder %s17, 0
      %p119 = por %p117, %p118
      %p120 = scmp.ne.s32.totalorder %s109, %s112
      %p121 = scmp.eq.s32.totalorder %s22, 3
      %p122 = por %p120, %p121
      %p123 = scmp.ne.s32.totalorder %s112, %s113
      %p124 = scmp.eq.s32.totalorder %s22, 0
      %p125 = por %p123, %p124
      %p126 = scmp.ne.s32.totalorder %s112, %s113
      %p127 = scmp.eq.s32.totalorder %s23, 3
      %p128 = por %p126, %p127
      %p130 = scmp.ne.s32.totalorder %s113, %s129
      %p131 = scmp.eq.s32.totalorder %s23, 0
      %p132 = por %p130, %p131
      %s133 = ssub.s32 %s24, %s36
      %s134 = ssub.s32 %s25, %s32
      %s135 = sor.u32 %s133, %s134
      %p136 = scmp.eq.s32.totalorder %s135, 0
      %s138 = sadd.s32 %s137, 1
      %s139 = scalar_select %p136, %s137, %s138
      %p142 = pneg %p136
      %p143 = scmp.eq.s32.totalorder %s17, 3
      %p144 = por %p142, %p143
      %p145 = scmp.ne.s32.totalorder %s137, %s140
      %p146 = scmp.eq.s32.totalorder %s17, 0
      %p147 = por %p145, %p146
      %p148 = scmp.ne.s32.totalorder %s137, %s140
      %p149 = scmp.eq.s32.totalorder %s22, 3
      %p150 = por %p148, %p149
      %p151 = scmp.ne.s32.totalorder %s140, %s141
      %p152 = scmp.eq.s32.totalorder %s22, 0
      %p153 = por %p151, %p152
      %p154 = scmp.ne.s32.totalorder %s140, %s141
      %p155 = scmp.eq.s32.totalorder %s23, 3
      %p156 = por %p154, %p155
      %p158 = scmp.ne.s32.totalorder %s141, %s157
      %p159 = scmp.eq.s32.totalorder %s23, 0
      %p160 = por %p158, %p159
      %s162 = sadd.s32 %s161, 1
      %p165 = scmp.eq.s32.totalorder %s17, 3
      %p166 = scmp.ne.s32.totalorder %s161, %s163
      %p167 = scmp.eq.s32.totalorder %s17, 0
      %p168 = por %p166, %p167
      %p169 = scmp.ne.s32.totalorder %s161, %s163
      %p170 = scmp.eq.s32.totalorder %s22, 3
      %p171 = por %p169, %p170
      %p172 = scmp.ne.s32.totalorder %s163, %s164
      %p173 = scmp.eq.s32.totalorder %s22, 0
      %p174 = por %p172, %p173
      %p175 = scmp.ne.s32.totalorder %s163, %s164
      %p176 = scmp.eq.s32.totalorder %s23, 3
      %p177 = por %p175, %p176
      %p179 = scmp.ne.s32.totalorder %s164, %s178
      %p180 = scmp.eq.s32.totalorder %s23, 0
      %p181 = por %p179, %p180
      %s183 = sadd.s32 %s182, 1
      %p186 = scmp.eq.s32.totalorder %s17, 3
      %p187 = scmp.ne.s32.totalorder %s182, %s184
      %p188 = scmp.eq.s32.totalorder %s17, 0
      %p189 = por %p187, %p188
      %p190 = scmp.ne.s32.totalorder %s182, %s184
      %p191 = scmp.eq.s32.totalorder %s22, 3
      %p192 = por %p190, %p191
      %p193 = scmp.ne.s32.totalorder %s184, %s185
      %p194 = scmp.eq.s32.totalorder %s22, 0
      %p195 = por %p193, %p194
      %p196 = scmp.ne.s32.totalorder %s184, %s185
      %p197 = scmp.eq.s32.totalorder %s23, 3
      %p198 = por %p196, %p197
      %p200 = scmp.ne.s32.totalorder %s185, %s199
      %p201 = scmp.eq.s32.totalorder %s23, 0
      %p202 = por %p200, %p201
      %s204 = sadd.s32 %s203, 1
      %p207 = scmp.eq.s32.totalorder %s17, 3
      %p208 = scmp.ne.s32.totalorder %s203, %s205
      %p209 = scmp.eq.s32.totalorder %s17, 0
      %p210 = por %p208, %p209
      %p211 = scmp.ne.s32.totalorder %s203, %s205
      %p212 = scmp.eq.s32.totalorder %s22, 3
      %p213 = por %p211, %p212
      %p214 = scmp.ne.s32.totalorder %s205, %s206
      %p215 = scmp.eq.s32.totalorder %s22, 0
      %p216 = por %p214, %p215
      %p217 = scmp.ne.s32.totalorder %s205, %s206
      %p218 = scmp.eq.s32.totalorder %s23, 3
      %p219 = por %p217, %p218
      %p221 = scmp.ne.s32.totalorder %s206, %s220
      %p222 = scmp.eq.s32.totalorder %s23, 0
      %p223 = por %p221, %p222
      %s225 = sadd.s32 %s224, 1
      %p228 = scmp.eq.s32.totalorder %s17, 3
      %p229 = scmp.ne.s32.totalorder %s224, %s226
      %p230 = scmp.eq.s32.totalorder %s17, 0
      %p231 = por %p229, %p230
      %p232 = scmp.ne.s32.totalorder %s224, %s226
      %p233 = scmp.eq.s32.totalorder %s22, 3
      %p234 = por %p232, %p233
      %p235 = scmp.ne.s32.totalorder %s226, %s227
      %p236 = scmp.eq.s32.totalorder %s22, 0
      %p237 = por %p235, %p236
      %p238 = scmp.ne.s32.totalorder %s226, %s227
      %p239 = scmp.eq.s32.totalorder %s23, 3
      %p240 = por %p238, %p239
      %p242 = scmp.ne.s32.totalorder %s227, %s241
      %p243 = scmp.eq.s32.totalorder %s23, 0
      %p244 = por %p242, %p243
      %s245 = ssub.s32 %s24, %s36
      %s246 = ssub.s32 %s25, %s32
      %s247 = sor.u32 %s245, %s246
      %p248 = scmp.eq.s32.totalorder %s247, 0
      %s250 = sadd.s32 %s249, 1
      %s251 = scalar_select %p248, %s249, %s250
      %p254 = pneg %p248
      %p255 = scmp.eq.s32.totalorder %s17, 3
      %p256 = por %p254, %p255
      %p257 = scmp.ne.s32.totalorder %s249, %s252
      %p258 = scmp.eq.s32.totalorder %s17, 0
      %p259 = por %p257, %p258
      %p260 = scmp.ne.s32.totalorder %s249, %s252
      %p261 = scmp.eq.s32.totalorder %s22, 3
      %p262 = por %p260, %p261
      %p263 = scmp.ne.s32.totalorder %s252, %s253
      %p264 = scmp.eq.s32.totalorder %s22, 0
      %p265 = por %p263, %p264
      %p266 = scmp.ne.s32.totalorder %s252, %s253
      %p267 = scmp.eq.s32.totalorder %s23, 3
      %p268 = por %p266, %p267
      %p270 = scmp.ne.s32.totalorder %s253, %s269
      %p271 = scmp.eq.s32.totalorder %s23, 0
      %p272 = por %p270, %p271
      %p273 = scmp.le.s32.totalorder 1, %s17
      %p274 = scmp.lt.s32.totalorder %s17, 5
      %p275 = pnand %p273, %p274
      %p276 = pneg %p275
      // Predicated region
      $region9: #{dilated_residual_layer.1} parent=5 // pred_check
        _
      $region10: #{dilated_residual_layer.1} parent=5 // pred_check_branch
        %278 = sbr.rel (%p275) target = $region12
      $region11: #{dilated_residual_layer.1} parent=5 // pred_region
        %s279 = ssub.s32 %s17, 1
        // Predicated region
        $region13: #{dilated_residual_layer.1} parent=11 // pred_check
          %p280 = pneg %p174
        $region14: #{dilated_residual_layer.1} parent=11 // pred_check_branch
          %282 = sbr.rel (%p280) target = $region16
        $region15: #{dilated_residual_layer.1} parent=11 // pred_region
          _
        $region16: #{dilated_residual_layer.1} parent=11 // pred_fallthru
          _
        // Predicated region
        $region17: #{dilated_residual_layer.1} parent=11 // pred_check
          %p283 = pneg %p195
        $region18: #{dilated_residual_layer.1} parent=11 // pred_check_branch
          %285 = sbr.rel (%p283) target = $region20
        $region19: #{dilated_residual_layer.1} parent=11 // pred_region
          _
        $region20: #{dilated_residual_layer.1} parent=11 // pred_fallthru
          _
        // Predicated region
        $region21: #{dilated_residual_layer.1} parent=11 // pred_check
          %p286 = pneg %p216
        $region22: #{dilated_residual_layer.1} parent=11 // pred_check_branch
          %288 = sbr.rel (%p286) target = $region24
        $region23: #{dilated_residual_layer.1} parent=11 // pred_region
          _
        $region24: #{dilated_residual_layer.1} parent=11 // pred_fallthru
          _
        // Predicated region
        $region25: #{dilated_residual_layer.1} parent=11 // pred_check
          %p289 = pneg %p237
        $region26: #{dilated_residual_layer.1} parent=11 // pred_check_branch
          %291 = sbr.rel (%p289) target = $region28
        $region27: #{dilated_residual_layer.1} parent=11 // pred_region
          _
        $region28: #{dilated_residual_layer.1} parent=11 // pred_fallthru
          _
      $region12: #{dilated_residual_layer.1} parent=5 // pred_fallthru
        _
      %p292 = scmp.lt.s32.totalorder %s17, 4
      // Predicated region
      $region29: #{dilated_residual_layer.1} parent=5 // pred_check
        %p293 = pneg %p292
      $region30: #{dilated_residual_layer.1} parent=5 // pred_check_branch
        %295 = sbr.rel (%p293) target = $region32
      $region31: #{dilated_residual_layer.1} parent=5 // pred_region
        // Predicated region
        $region33: #{dilated_residual_layer.1} parent=31 // pred_check
          %p296 = pneg %p57
        $region34: #{dilated_residual_layer.1} parent=31 // pred_check_branch
          %298 = sbr.rel (%p296) target = $region36
        $region35: #{dilated_residual_layer.1} parent=31 // pred_region
          %s299 = sand.u32 %s47, 1
          %s300 = sand.u32 %s47, 1
          %s301 = smul.addr %s300, 32
          %s302 = scalar_lea.vmem [#allocation3], %s301
          %s303 = ssub.s32 %s25, 1
          %p304 = scmp.gt.s32.totalorder %s303, 0
          %s305 = scalar_select %p304, %s303, 0
          %s306 = smul.u32 2, %s305
          %s307 = smul.addr %s24, 8
          %s308 = sadd.s32 %s306, %s307
          %s309 = smul.addr %s308, 8
          %s310 = scalar_lea.vmem %s0, %s309
          // Predicated region
          $region37: #{dilated_residual_layer.1} parent=35 // pred_check
            _
          $region38: #{dilated_residual_layer.1} parent=35 // pred_check_branch
            %312 = sbr.rel (0) target = $region40
          $region39: #{dilated_residual_layer.1} parent=35 // pred_region
            // Predicated region
            $region41: #{dilated_residual_layer.1} parent=39 // pred_check
              _
            $region42: #{dilated_residual_layer.1} parent=39 // pred_check_branch
              %314 = sbr.rel (0) target = $region44
            $region43: #{dilated_residual_layer.1} parent=39 // pred_region
              loop: start=0, step=1, limit=1
              $region45: #{dilated_residual_layer.1} parent=43 // loop_pre_header
                _
              $region46: #{dilated_residual_layer.1} parent=43 // loop_header
                %s316 = sphi 0, %s320
                %p317 = scmp.ge.s32.totalorder %s316, 1
                %s321 = sphi %s310, %s310
                %s322 = sphi %s302, %s302
              $region47: #{dilated_residual_layer.1} parent=43 // loop_header_branch
                %319 = sbr.rel (%p317) target = $region51
              $region48: #{dilated_residual_layer.1} parent=43 // loop_body
                %v323 = vld [vmem:[%s321] sm:$0xff]
                %324 = vst [vmem:[%s322] sm:$0xff] %v323
                %v325 = vld [vmem:[%s321 + $0x8] sm:$0xff]
                %326 = vst [vmem:[%s322 + $0x8] sm:$0xff] %v325
                %v327 = vld [vmem:[%s321 + $0x20] sm:$0xff]
                %328 = vst [vmem:[%s322 + $0x10] sm:$0xff] %v327
                %v329 = vld [vmem:[%s321 + $0x28] sm:$0xff]
                %330 = vst [vmem:[%s322 + $0x18] sm:$0xff] %v329
              $region49: #{dilated_residual_layer.1} parent=43 // loop_footer
                %s320 = sadd.s32 1, %s316
              $region50: #{dilated_residual_layer.1} parent=43 // loop_footer_branch
                %315 = sbr.rel target = $region46
              $region51: #{dilated_residual_layer.1} parent=43 // loop_exit
                _
            $region44: #{dilated_residual_layer.1} parent=39 // pred_fallthru
              _
            // Predicated region
            $region52: #{dilated_residual_layer.1} parent=39 // pred_check
              _
            $region53: #{dilated_residual_layer.1} parent=39 // pred_check_branch
              %332 = sbr.rel target = $region55
            $region54: #{dilated_residual_layer.1} parent=39 // pred_region
              _
            $region55: #{dilated_residual_layer.1} parent=39 // pred_fallthru
              _
          $region40: #{dilated_residual_layer.1} parent=35 // pred_fallthru
            _
          %333 = vnop
        $region36: #{dilated_residual_layer.1} parent=31 // pred_fallthru
          _
        // Predicated region
        $region56: #{dilated_residual_layer.1} parent=31 // pred_check
          %p334 = pneg %p85
        $region57: #{dilated_residual_layer.1} parent=31 // pred_check_branch
          %336 = sbr.rel (%p334) target = $region59
        $region58: #{dilated_residual_layer.1} parent=31 // pred_region
          %s337 = sand.u32 %s75, 1
          %s338 = sand.u32 %s75, 1
          %s339 = smul.addr %s338, 32
          %s340 = scalar_lea.vmem [#allocation4], %s339
          %s341 = smul.u32 2, %s25
          %s342 = smul.addr %s24, 8
          %s343 = sadd.s32 %s341, %s342
          %s344 = smul.addr %s343, 8
          %s345 = scalar_lea.vmem %s1, %s344
          // Predicated region
          $region60: #{dilated_residual_layer.1} parent=58 // pred_check
            _
          $region61: #{dilated_residual_layer.1} parent=58 // pred_check_branch
            %347 = sbr.rel (0) target = $region63
          $region62: #{dilated_residual_layer.1} parent=58 // pred_region
            // Predicated region
            $region64: #{dilated_residual_layer.1} parent=62 // pred_check
              _
            $region65: #{dilated_residual_layer.1} parent=62 // pred_check_branch
              %349 = sbr.rel (0) target = $region67
            $region66: #{dilated_residual_layer.1} parent=62 // pred_region
              loop: start=0, step=1, limit=1
              $region68: #{dilated_residual_layer.1} parent=66 // loop_pre_header
                _
              $region69: #{dilated_residual_layer.1} parent=66 // loop_header
                %s351 = sphi 0, %s355
                %p352 = scmp.ge.s32.totalorder %s351, 1
                %s356 = sphi %s345, %s345
                %s357 = sphi %s340, %s340
              $region70: #{dilated_residual_layer.1} parent=66 // loop_header_branch
                %354 = sbr.rel (%p352) target = $region74
              $region71: #{dilated_residual_layer.1} parent=66 // loop_body
                %v358 = vld [vmem:[%s356] sm:$0xff]
                %359 = vst [vmem:[%s357] sm:$0xff] %v358
                %v360 = vld [vmem:[%s356 + $0x8] sm:$0xff]
                %361 = vst [vmem:[%s357 + $0x8] sm:$0xff] %v360
                %v362 = vld [vmem:[%s356 + $0x20] sm:$0xff]
                %363 = vst [vmem:[%s357 + $0x10] sm:$0xff] %v362
                %v364 = vld [vmem:[%s356 + $0x28] sm:$0xff]
                %365 = vst [vmem:[%s357 + $0x18] sm:$0xff] %v364
              $region72: #{dilated_residual_layer.1} parent=66 // loop_footer
                %s355 = sadd.s32 1, %s351
              $region73: #{dilated_residual_layer.1} parent=66 // loop_footer_branch
                %350 = sbr.rel target = $region69
              $region74: #{dilated_residual_layer.1} parent=66 // loop_exit
                _
            $region67: #{dilated_residual_layer.1} parent=62 // pred_fallthru
              _
            // Predicated region
            $region75: #{dilated_residual_layer.1} parent=62 // pred_check
              _
            $region76: #{dilated_residual_layer.1} parent=62 // pred_check_branch
              %367 = sbr.rel target = $region78
            $region77: #{dilated_residual_layer.1} parent=62 // pred_region
              _
            $region78: #{dilated_residual_layer.1} parent=62 // pred_fallthru
              _
          $region63: #{dilated_residual_layer.1} parent=58 // pred_fallthru
            _
          %368 = vnop
        $region59: #{dilated_residual_layer.1} parent=31 // pred_fallthru
          _
        // Predicated region
        $region79: #{dilated_residual_layer.1} parent=31 // pred_check
          %p369 = pneg %p119
        $region80: #{dilated_residual_layer.1} parent=31 // pred_check_branch
          %371 = sbr.rel (%p369) target = $region82
        $region81: #{dilated_residual_layer.1} parent=31 // pred_region
          %s372 = sand.u32 %s109, 1
          %s373 = sand.u32 %s109, 1
          %s374 = smul.addr %s373, 32
          %s375 = scalar_lea.vmem [#allocation5], %s374
          %s376 = sadd.s32 %s25, 1
          %p377 = scmp.lt.s32.totalorder %s376, 1
          %s378 = scalar_select %p377, %s376, 1
          %s379 = smul.u32 2, %s378
          %s380 = smul.addr %s24, 8
          %s381 = sadd.s32 %s379, %s380
          %s382 = smul.addr %s381, 8
          %s383 = scalar_lea.vmem %s2, %s382
          // Predicated region
          $region83: #{dilated_residual_layer.1} parent=81 // pred_check
            _
          $region84: #{dilated_residual_layer.1} parent=81 // pred_check_branch
            %385 = sbr.rel (0) target = $region86
          $region85: #{dilated_residual_layer.1} parent=81 // pred_region
            // Predicated region
            $region87: #{dilated_residual_layer.1} parent=85 // pred_check
              _
            $region88: #{dilated_residual_layer.1} parent=85 // pred_check_branch
              %387 = sbr.rel (0) target = $region90
            $region89: #{dilated_residual_layer.1} parent=85 // pred_region
              loop: start=0, step=1, limit=1
              $region91: #{dilated_residual_layer.1} parent=89 // loop_pre_header
                _
              $region92: #{dilated_residual_layer.1} parent=89 // loop_header
                %s389 = sphi 0, %s393
                %p390 = scmp.ge.s32.totalorder %s389, 1
                %s394 = sphi %s383, %s383
                %s395 = sphi %s375, %s375
              $region93: #{dilated_residual_layer.1} parent=89 // loop_header_branch
                %392 = sbr.rel (%p390) target = $region97
              $region94: #{dilated_residual_layer.1} parent=89 // loop_body
                %v396 = vld [vmem:[%s394] sm:$0xff]
                %397 = vst [vmem:[%s395] sm:$0xff] %v396
                %v398 = vld [vmem:[%s394 + $0x8] sm:$0xff]
                %399 = vst [vmem:[%s395 + $0x8] sm:$0xff] %v398
                %v400 = vld [vmem:[%s394 + $0x20] sm:$0xff]
                %401 = vst [vmem:[%s395 + $0x10] sm:$0xff] %v400
                %v402 = vld [vmem:[%s394 + $0x28] sm:$0xff]
                %403 = vst [vmem:[%s395 + $0x18] sm:$0xff] %v402
              $region95: #{dilated_residual_layer.1} parent=89 // loop_footer
                %s393 = sadd.s32 1, %s389
              $region96: #{dilated_residual_layer.1} parent=89 // loop_footer_branch
                %388 = sbr.rel target = $region92
              $region97: #{dilated_residual_layer.1} parent=89 // loop_exit
                _
            $region90: #{dilated_residual_layer.1} parent=85 // pred_fallthru
              _
            // Predicated region
            $region98: #{dilated_residual_layer.1} parent=85 // pred_check
              _
            $region99: #{dilated_residual_layer.1} parent=85 // pred_check_branch
              %405 = sbr.rel target = $region101
            $region100: #{dilated_residual_layer.1} parent=85 // pred_region
              _
            $region101: #{dilated_residual_layer.1} parent=85 // pred_fallthru
              _
          $region86: #{dilated_residual_layer.1} parent=81 // pred_fallthru
            _
          %406 = vnop
        $region82: #{dilated_residual_layer.1} parent=31 // pred_fallthru
          _
        // Predicated region
        $region102: #{dilated_residual_layer.1} parent=31 // pred_check
          %p407 = pneg %p147
        $region103: #{dilated_residual_layer.1} parent=31 // pred_check_branch
          %409 = sbr.rel (%p407) target = $region105
        $region104: #{dilated_residual_layer.1} parent=31 // pred_region
          %s410 = smul.u32 2, %s25
          %p411 = scmp.lt.s32.totalorder %s24, 1
          %s412 = scalar_select %p411, %s24, 1
          %p413 = scmp.lt.s32.totalorder %s410, 3
          %s414 = scalar_select %p413, %s410, 3
          %s415 = smul.addr %s412, 4
          %s416 = sadd.s32 %s414, %s415
          %s417 = scalar_lea.vmem %s3, %s416
          %s418 = smul.u32 2, %s25
        $region105: #{dilated_residual_layer.1} parent=31 // pred_fallthru
          _
      $region32: #{dilated_residual_layer.1} parent=5 // pred_fallthru
        _
      %p419 = scmp.le.s32.totalorder 1, %s17
      %p420 = scmp.lt.s32.totalorder %s17, 5
      %p421 = pnand %p419, %p420
      %p422 = pneg %p421
      // Predicated region
      $region106: #{dilated_residual_layer.1} parent=5 // pred_check
        _
      $region107: #{dilated_residual_layer.1} parent=5 // pred_check_branch
        %424 = sbr.rel (%p421) target = $region109
      $region108: #{dilated_residual_layer.1} parent=5 // pred_region
        %s425 = ssub.s32 %s17, 1
        %s426 = sand.u32 %s50, 1
        %s427 = sand.u32 %s50, 1
        %s428 = smul.addr %s427, 32
        %s429 = scalar_lea.vmem [#allocation3], %s428
        // Predicated region
        $region110: #{dilated_residual_layer.1} parent=108 // pred_check
          %p430 = pneg %p63
        $region111: #{dilated_residual_layer.1} parent=108 // pred_check_branch
          %432 = sbr.rel (%p430) target = $region113
        $region112: #{dilated_residual_layer.1} parent=108 // pred_region
          _
        $region113: #{dilated_residual_layer.1} parent=108 // pred_fallthru
          _
        %s433 = sand.u32 %s78, 1
        %s434 = sand.u32 %s78, 1
        %s435 = smul.addr %s434, 32
        %s436 = scalar_lea.vmem [#allocation4], %s435
        // Predicated region
        $region114: #{dilated_residual_layer.1} parent=108 // pred_check
          %p437 = pneg %p91
        $region115: #{dilated_residual_layer.1} parent=108 // pred_check_branch
          %439 = sbr.rel (%p437) target = $region117
        $region116: #{dilated_residual_layer.1} parent=108 // pred_region
          _
        $region117: #{dilated_residual_layer.1} parent=108 // pred_fallthru
          _
        %s440 = sand.u32 %s112, 1
        %s441 = sand.u32 %s112, 1
        %s442 = smul.addr %s441, 32
        %s443 = scalar_lea.vmem [#allocation5], %s442
        // Predicated region
        $region118: #{dilated_residual_layer.1} parent=108 // pred_check
          %p444 = pneg %p125
        $region119: #{dilated_residual_layer.1} parent=108 // pred_check_branch
          %446 = sbr.rel (%p444) target = $region121
        $region120: #{dilated_residual_layer.1} parent=108 // pred_region
          _
        $region121: #{dilated_residual_layer.1} parent=108 // pred_fallthru
          _
        %s447 = sand.u32 %s50, 1
        %s448 = sand.u32 %s50, 1
        %s449 = smul.addr %s448, 32
        %s450 = scalar_lea.vmem [#allocation3], %s449
        %p451 = pneg %p63
        %p452 = pneg %p60
        %s453 = sand.u32 %s78, 1
        %s454 = sand.u32 %s78, 1
        %s455 = smul.addr %s454, 32
        %s456 = scalar_lea.vmem [#allocation4], %s455
        %p457 = pneg %p91
        %p458 = pneg %p88
        %s459 = sand.u32 %s112, 1
        %s460 = sand.u32 %s112, 1
        %s461 = smul.addr %s460, 32
        %s462 = scalar_lea.vmem [#allocation5], %s461
        %p463 = pneg %p125
        %p464 = pneg %p122
        %s465 = smul.u32 2, %s27
        %p466 = scmp.lt.s32.totalorder %s26, 1
        %s467 = scalar_select %p466, %s26, 1
        %p468 = scmp.lt.s32.totalorder %s465, 3
        %s469 = scalar_select %p468, %s465, 3
        %s470 = smul.addr %s467, 4
        %s471 = sadd.s32 %s469, %s470
        %s472 = scalar_lea.vmem %s3, %s471
        %p473 = pneg %p153
        %p474 = pneg %p150
        %p475 = pneg %p174
        %p476 = pneg %p171
        %p477 = pneg %p195
        %p478 = pneg %p192
        %p479 = pneg %p216
        %p480 = pneg %p213
        %p481 = pneg %p237
        %p482 = pneg %p234
        %p483 = pneg %p265
        %p484 = pneg %p262
        %s485 = sand.u32 %s252, 1
        %s486 = scalar_lea.sflag [#allocation7], %s485
        %s487 = sand.u32 %s252, 1
        %s488 = smul.addr %s487, 32
        %s489 = scalar_lea.vmem [#allocation6], %s488
        %s490 = ssub.s32 %s27, 1
        %p491 = scmp.gt.s32.totalorder %s490, 0
        %s492 = scalar_select %p491, %s490, 0
        %s493 = smul.u32 2, %s492
        %s494 = smul.u32 2, %s27
        %s495 = sadd.s32 %s27, 1
        %p496 = scmp.lt.s32.totalorder %s495, 1
        %s497 = scalar_select %p496, %s495, 1
        %s498 = smul.u32 2, %s497
        %s499 = smul.u32 2, %s27
        %p500 = scmp.lt.s32.totalorder %s26, 1
        %s501 = scalar_select %p500, %s26, 1
        %p502 = scmp.lt.s32.totalorder %s499, 3
        %s503 = scalar_select %p502, %s499, 3
        %s504 = smul.addr %s501, 4
        %s505 = sadd.s32 %s503, %s504
        %s506 = scalar_lea.vmem %s3, %s505
        %s507 = smul.u32 2, %s27
        %s508 = smul.u32 2, %s27
        %v509 = vld [vmem:[%s436] sm:$0xff]
        %v510 = vld [vmem:[%s436 + $0x8] sm:$0xff]
        %v511 = vld [vmem:[%s436 + $0x10] sm:$0xff]
        %v512 = vld [vmem:[%s436 + $0x18] sm:$0xff]
        %p513 = scmp.gt.s32.totalorder %s27, 0
        %s514 = scalar_select %p513, 1, 0
        %s515 = scvt.s32.f32 %s514
        %p516 = scmp.lt.s32.totalorder %s27, 1
        %s517 = scalar_select %p516, 1, 0
        %s518 = scvt.s32.f32 %s517
        %v519 = vld [vmem:[%s429] sm:$0xff]
        %v520 = vld [vmem:[%s429 + $0x8] sm:$0xff]
        %v521 = vld [vmem:[%s429 + $0x10] sm:$0xff]
        %v522 = vld [vmem:[%s429 + $0x18] sm:$0xff]
        %v523 = vstv %s515
        %v524 = vmul.f32 %v519, %v523
        %v525 = vmul.f32 %v520, %v523
        %v526 = vmul.f32 %v521, %v523
        %v527 = vmul.f32 %v522, %v523
        %528 = vst [vmem:[#allocation2] sm:$0xff] %v524
        %529 = vst [vmem:[#allocation2 + $0x8] sm:$0xff] %v525
        %530 = vst [vmem:[#allocation2 + $0x30] sm:$0xff] %v526
        %531 = vst [vmem:[#allocation2 + $0x38] sm:$0xff] %v527
        %532 = vst [vmem:[#allocation2 + $0x10] sm:$0xff] %v509
        %533 = vst [vmem:[#allocation2 + $0x18] sm:$0xff] %v510
        %534 = vst [vmem:[#allocation2 + $0x40] sm:$0xff] %v511
        %535 = vst [vmem:[#allocation2 + $0x48] sm:$0xff] %v512
        %v536 = vld [vmem:[%s443] sm:$0xff]
        %v537 = vld [vmem:[%s443 + $0x8] sm:$0xff]
        %v538 = vld [vmem:[%s443 + $0x10] sm:$0xff]
        %v539 = vld [vmem:[%s443 + $0x18] sm:$0xff]
        %v540 = vstv %s518
        %v541 = vmul.f32 %v536, %v540
        %v542 = vmul.f32 %v537, %v540
        %v543 = vmul.f32 %v538, %v540
        %v544 = vmul.f32 %v539, %v540
        %545 = vst [vmem:[#allocation2 + $0x20] sm:$0xff] %v541
        %546 = vst [vmem:[#allocation2 + $0x28] sm:$0xff] %v542
        %547 = vst [vmem:[#allocation2 + $0x50] sm:$0xff] %v543
        %548 = vst [vmem:[#allocation2 + $0x58] sm:$0xff] %v544
        %v549 = vld [vmem:[#allocation2 + $0x8] sm:$0xff]
        %v550 = vld [vmem:[#allocation2 + $0x10] sm:$0xff]
        %v551 = vld [vmem:[#allocation2 + $0x18] sm:$0xff]
        %v552 = vld [vmem:[#allocation2 + $0x38] sm:$0xff]
        %v553 = vld [vmem:[#allocation2 + $0x40] sm:$0xff]
        %v554 = vld [vmem:[#allocation2 + $0x48] sm:$0xff]
        %v555 = vld [vmem:[#allocation2 + $0x20] sm:$0xff]
        %v556 = vld [vmem:[#allocation2 + $0x50] sm:$0xff]
        %561 = vrot.lane.b32.xlu0 %v509, 124
        %v562 = vpop.permute.xlu0 %561
        %563 = vrot.lane.b32.xlu0 %v510, 124
        %v564 = vpop.permute.xlu0 %563
        %565 = vrot.lane.b32.xlu0 %v511, 124
        %v566 = vpop.permute.xlu0 %565
        %567 = vrot.lane.b32.xlu0 %v512, 124
        %v568 = vpop.permute.xlu0 %567
        %vm569 = vcmask 1014784
        %v570 = vsel %vm569, %v562, %v564
        %v571 = vsel %vm569, %v566, %v568
        %578 = vrot.lane.b32.xlu0 %v550, 120
        %v579 = vpop.permute.xlu0 %578
        %580 = vrot.lane.b32.xlu0 %v551, 120
        %v581 = vpop.permute.xlu0 %580
        %582 = vrot.lane.b32.xlu0 %v555, 120
        %v583 = vpop.permute.xlu0 %582
        %584 = vrot.lane.b32.xlu0 %v553, 120
        %v585 = vpop.permute.xlu0 %584
        %586 = vrot.lane.b32.xlu0 %v554, 120
        %v587 = vpop.permute.xlu0 %586
        %588 = vrot.lane.b32.xlu0 %v556, 120
        %v589 = vpop.permute.xlu0 %588
        %vm590 = vcmask 982016
        %v591 = vsel %vm590, %v579, %v581
        %v592 = vsel %vm590, %v581, %v583
        %v593 = vsel %vm590, %v585, %v587
        %v594 = vsel %vm590, %v587, %v589
        %v595 = vld [vmem:[%s4] sm:$0xff]
        %v596 = vld [vmem:[%s4 + $0x8] sm:$0xff]
        %v597 = vld [vmem:[%s5] sm:$0xff]
        %v598 = vld [vmem:[%s5 + $0x8] sm:$0xff]
        %600 = vset.pattern.permute.xlu0 0
        %601 = vperm.xlu0 %600, %v597
        %v602 = vpop.permute.xlu0 %601
        %605 = vset.pattern.permute.xlu0 0
        %606 = vperm.xlu0 %605, %v598
        %v607 = vpop.permute.xlu0 %606
        %611 = vrot.lane.b32.xlu0 %v549, 4
        %v612 = vpop.permute.xlu0 %611
        %613 = vrot.lane.b32.xlu0 %v550, 4
        %v614 = vpop.permute.xlu0 %613
        %615 = vrot.lane.b32.xlu0 %v551, 4
        %v616 = vpop.permute.xlu0 %615
        %617 = vrot.lane.b32.xlu0 %v552, 4
        %v618 = vpop.permute.xlu0 %617
        %619 = vrot.lane.b32.xlu0 %v553, 4
        %v620 = vpop.permute.xlu0 %619
        %621 = vrot.lane.b32.xlu0 %v554, 4
        %v622 = vpop.permute.xlu0 %621
        %623 = vrot.lane.b32.xlu0 %v562, 4
        %v624 = vpop.permute.xlu0 %623
        %625 = vrot.lane.b32.xlu0 %v570, 4
        %v626 = vpop.permute.xlu0 %625
        %627 = vrot.lane.b32.xlu0 %v564, 4
        %v628 = vpop.permute.xlu0 %627
        %629 = vrot.lane.b32.xlu0 %v566, 4
        %v630 = vpop.permute.xlu0 %629
        %631 = vrot.lane.b32.xlu0 %v571, 4
        %v632 = vpop.permute.xlu0 %631
        %633 = vrot.lane.b32.xlu0 %v568, 4
        %v634 = vpop.permute.xlu0 %633
        %635 = vrot.lane.b32.xlu0 %v579, 4
        %v636 = vpop.permute.xlu0 %635
        %637 = vrot.lane.b32.xlu0 %v591, 4
        %v638 = vpop.permute.xlu0 %637
        %639 = vrot.lane.b32.xlu0 %v592, 4
        %v640 = vpop.permute.xlu0 %639
        %641 = vrot.lane.b32.xlu0 %v585, 4
        %v642 = vpop.permute.xlu0 %641
        %643 = vrot.lane.b32.xlu0 %v593, 4
        %v644 = vpop.permute.xlu0 %643
        %645 = vrot.lane.b32.xlu0 %v594, 4
        %v646 = vpop.permute.xlu0 %645
        %vm647 = vcmask 31744
        %v648 = vsel %vm647, %v612, %v614
        %v649 = vsel %vm647, %v614, %v616
        %v650 = vsel %vm647, %v618, %v620
        %v651 = vsel %vm647, %v620, %v622
        %v652 = vsel %vm647, %v624, %v626
        %v653 = vsel %vm647, %v626, %v628
        %v654 = vsel %vm647, %v630, %v632
        %v655 = vsel %vm647, %v632, %v634
        %v656 = vsel %vm647, %v636, %v638
        %v657 = vsel %vm647, %v638, %v640
        %v658 = vsel %vm647, %v642, %v644
        %v659 = vsel %vm647, %v644, %v646
        %vm672 = vcmask 392192
        %v674 = vsel %vm672, %v595, 0
        %v677 = vsel %vm672, %v596, 0
        %679 = vmatprep.subr.mxu0 %v649
        %680 = vmatpush1.msra.mxu0 %v648
        %681 = vmatprep.subr.mxu0 %v651
        %682 = vmatpush1.msra.mxu0 %v650
        %683 = vmatprep.subr.mxu0 %v653
        %684 = vmatpush1.msra.mxu0 %v652
        %685 = vmatprep.subr.mxu0 %v655
        %686 = vmatpush1.msra.mxu0 %v654
        %687 = vmatprep.subr.mxu0 %v657
        %688 = vmatpush1.msra.mxu0 %v656
        %689 = vmatprep.subr.mxu0 %v659
        %690 = vmatpush1.msra.mxu0 %v658
        %691 = vmatprep.subr.mxu0 0.0
        %692 = vmatpush1.msra.mxu0 0.0
        %693 = vmatprep.subr.mxu0 0.0
        %694 = vmatpush1.msra.mxu0 0.0
        %695 = vmatprep.subr.mxu0 0.0
        %696 = vmatpush1.msra.mxu0 0.0
        %697 = vmatprep.subr.mxu0 0.0
        %698 = vmatpush1.msra.mxu0 0.0
        %699 = vmatprep.subr.mxu0 0.0
        %700 = vmatpush1.msra.mxu0 0.0
        %701 = vmatprep.subr.mxu0 0.0
        %702 = vmatpush1.msra.mxu0 0.0
        %703 = vmatprep.subr.mxu0 0.0
        %704 = vmatpush1.msra.mxu0 0.0
        %705 = vmatprep.subr.mxu0 0.0
        %706 = vmatpush1.msra.mxu0 0.0
        %707 = vmatprep.subr.mxu0 0.0
        %708 = vmatpush1.msra.mxu0 0.0
        %709 = vmatprep.subr.mxu0 0.0
        %710 = vmatpush1.msra.mxu0 0.0
        %711 = vmatprep.subr.mxu0 0.0
        %712 = vmatpush1.msra.mxu0 0.0
        %713 = vmatprep.subr.mxu0 0.0
        %714 = vmatpush1.msra.mxu0 0.0
        %715 = vmatprep.subr.mxu0 0.0
        %716 = vmatpush1.msra.mxu0 0.0
        %717 = vmatprep.subr.mxu0 0.0
        %718 = vmatpush1.msra.mxu0 0.0
        %719 = vmatprep.subr.mxu0 0.0
        %720 = vmatpush1.msra.mxu0 0.0
        %721 = vmatprep.subr.mxu0 0.0
        %722 = vmatpush1.msra.mxu0 0.0
        %723 = vmatprep.subr.mxu0 0.0
        %724 = vmatpush1.msra.mxu0 0.0
        %725 = vmatprep.subr.mxu0 0.0
        %726 = vmatpush1.msra.mxu0 0.0
        %727 = vmatprep.subr.mxu0 0.0
        %728 = vmatpush1.msra.mxu0 0.0
        %729 = vmatprep.subr.mxu0 0.0
        %730 = vmatpush1.msra.mxu0 0.0
        %731 = vmatprep.subr.mxu0 0.0
        %732 = vmatpush1.msra.mxu0 0.0
        %733 = vmatprep.subr.mxu0 0.0
        %734 = vmatpush1.msra.mxu0 0.0
        %735 = vmatprep.subr.mxu0 0.0
        %736 = vmatpush1.msra.mxu0 0.0
        %737 = vmatprep.subr.mxu0 0.0
        %738 = vmatpush1.msra.mxu0 0.0
        %739 = vmatprep.subr.mxu0 0.0
        %740 = vmatpush1.msra.mxu0 0.0
        %741 = vmatprep.subr.mxu0 0.0
        %742 = vmatpush1.msra.mxu0 0.0
        %743 = vmatprep.mubr.f32.mxu0 0.0
        %744 = vmatmul.mubr.f32.gmra.mrb[0].mxu0 %v674
        %v745 = vpop.f32.mrb[0].mxu0
        %v746 = vadd.f32 %v602, %v745
        %v747 = vpop.f32.mrb[0].mxu0
        %v748 = vadd.f32 %v602, %v747
        %749 = vmatprep.mubr.f32.mxu0 0.0
        %750 = vmatmul.mubr.f32.gmra.mrb[0].mxu0 %v677
        %v751 = vpop.f32.mrb[0].mxu0
        %v752 = vadd.f32 %v607, %v751
        %v753 = vpop.f32.mrb[0].mxu0
        %v754 = vadd.f32 %v607, %v753
        %755 = vdwg.mxu0
        %v756 = vmax.f32 %v746, 0.0
        %v757 = vmax.f32 %v748, 0.0
        %v758 = vmax.f32 %v752, 0.0
        %v759 = vmax.f32 %v754, 0.0
        %v760 = vld [vmem:[%s6] sm:$0xff]
        %v761 = vld [vmem:[%s6 + $0x8] sm:$0xff]
        %v762 = vld [vmem:[%s7] sm:$0xff]
        %v763 = vld [vmem:[%s7 + $0x8] sm:$0xff]
        %765 = vset.pattern.permute.xlu0 0
        %766 = vperm.xlu0 %765, %v762
        %v767 = vpop.permute.xlu0 %766
        %770 = vset.pattern.permute.xlu0 0
        %771 = vperm.xlu0 %770, %v763
        %v772 = vpop.permute.xlu0 %771
        %vm774 = vcmask 130048
        %v776 = vsel %vm774, %v760, 0
        %v779 = vsel %vm774, %v761, 0
        %781 = vmatprep.subr.mxu0 %v757
        %782 = vmatpush1.msra.mxu0 %v756
        %783 = vmatprep.subr.mxu0 %v759
        %784 = vmatpush1.msra.mxu0 %v758
        %785 = vmatprep.subr.mxu0 0.0
        %786 = vmatpush1.msra.mxu0 0.0
        %787 = vmatprep.subr.mxu0 0.0
        %788 = vmatpush1.msra.mxu0 0.0
        %789 = vmatprep.subr.mxu0 0.0
        %790 = vmatpush1.msra.mxu0 0.0
        %791 = vmatprep.subr.mxu0 0.0
        %792 = vmatpush1.msra.mxu0 0.0
        %793 = vmatprep.subr.mxu0 0.0
        %794 = vmatpush1.msra.mxu0 0.0
        %795 = vmatprep.subr.mxu0 0.0
        %796 = vmatpush1.msra.mxu0 0.0
        %797 = vmatprep.subr.mxu0 0.0
        %798 = vmatpush1.msra.mxu0 0.0
        %799 = vmatprep.subr.mxu0 0.0
        %800 = vmatpush1.msra.mxu0 0.0
        %801 = vmatprep.subr.mxu0 0.0
        %802 = vmatpush1.msra.mxu0 0.0
        %803 = vmatprep.subr.mxu0 0.0
        %804 = vmatpush1.msra.mxu0 0.0
        %805 = vmatprep.subr.mxu0 0.0
        %806 = vmatpush1.msra.mxu0 0.0
        %807 = vmatprep.subr.mxu0 0.0
        %808 = vmatpush1.msra.mxu0 0.0
        %809 = vmatprep.subr.mxu0 0.0
        %810 = vmatpush1.msra.mxu0 0.0
        %811 = vmatprep.subr.mxu0 0.0
        %812 = vmatpush1.msra.mxu0 0.0
        %813 = vmatprep.subr.mxu0 0.0
        %814 = vmatpush1.msra.mxu0 0.0
        %815 = vmatprep.subr.mxu0 0.0
        %816 = vmatpush1.msra.mxu0 0.0
        %817 = vmatprep.subr.mxu0 0.0
        %818 = vmatpush1.msra.mxu0 0.0
        %819 = vmatprep.subr.mxu0 0.0
        %820 = vmatpush1.msra.mxu0 0.0
        %821 = vmatprep.subr.mxu0 0.0
        %822 = vmatpush1.msra.mxu0 0.0
        %823 = vmatprep.subr.mxu0 0.0
        %824 = vmatpush1.msra.mxu0 0.0
        %825 = vmatprep.subr.mxu0 0.0
        %826 = vmatpush1.msra.mxu0 0.0
        %827 = vmatprep.subr.mxu0 0.0
        %828 = vmatpush1.msra.mxu0 0.0
        %829 = vmatprep.subr.mxu0 0.0
        %830 = vmatpush1.msra.mxu0 0.0
        %831 = vmatprep.subr.mxu0 0.0
        %832 = vmatpush1.msra.mxu0 0.0
        %833 = vmatprep.subr.mxu0 0.0
        %834 = vmatpush1.msra.mxu0 0.0
        %835 = vmatprep.subr.mxu0 0.0
        %836 = vmatpush1.msra.mxu0 0.0
        %837 = vmatprep.subr.mxu0 0.0
        %838 = vmatpush1.msra.mxu0 0.0
        %839 = vmatprep.subr.mxu0 0.0
        %840 = vmatpush1.msra.mxu0 0.0
        %841 = vmatprep.subr.mxu0 0.0
        %842 = vmatpush1.msra.mxu0 0.0
        %843 = vmatprep.subr.mxu0 0.0
        %844 = vmatpush1.msra.mxu0 0.0
        %845 = vmatprep.mubr.f32.mxu0 0.0
        %846 = vmatmul.mubr.f32.gmra.mrb[0].mxu0 %v776
        %v847 = vpop.f32.mrb[0].mxu0
        %v848 = vadd.f32 %v767, %v847
        %v849 = vpop.f32.mrb[0].mxu0
        %v850 = vadd.f32 %v767, %v849
        %851 = vmatprep.mubr.f32.mxu0 0.0
        %852 = vmatmul.mubr.f32.gmra.mrb[0].mxu0 %v779
        %v853 = vpop.f32.mrb[0].mxu0
        %v854 = vadd.f32 %v772, %v853
        %v855 = vpop.f32.mrb[0].mxu0
        %v856 = vadd.f32 %v772, %v855
        %857 = vdwg.mxu0
        %v858 = vadd.f32 %v509, %v848
        %v859 = vadd.f32 %v510, %v850
        %v860 = vadd.f32 %v511, %v854
        %v861 = vadd.f32 %v512, %v856
        %v862 = vld [vmem:[%s506] sm:$0x3]
        %v864 = vlaneseq
        %v865 = vshrl.u32 %v864, 7
        %v866 = vsub.s32 0, %v865
        %v867 = vrot.slane %v862, %v866
        %v868 = vlaneseq
        %v869 = vshrl.u32 %v868, 7
        %v870 = vsub.s32 1, %v869
        %v871 = vrot.slane %v862, %v870
        %v874 = vmul.f32 %v858, %v867
        %v875 = vmul.f32 %v859, %v871
        %v876 = vmul.f32 %v860, %v867
        %v877 = vmul.f32 %v861, %v871
        %878 = vst [vmem:[%s489] sm:$0xff] %v874
        %879 = vst [vmem:[%s489 + $0x8] sm:$0xff] %v875
        %880 = vst [vmem:[%s489 + $0x10] sm:$0xff] %v876
        %881 = vst [vmem:[%s489 + $0x18] sm:$0xff] %v877
        %s882 = sand.u32 %s252, 1
        %s883 = scalar_lea.sflag [#allocation7], %s882
        %s884 = sand.u32 %s252, 1
        %s885 = smul.addr %s884, 32
        %s886 = scalar_lea.vmem [#allocation6], %s885
        // Predicated region
        $region122: #{dilated_residual_layer.1} parent=108 // pred_check
          %p887 = pneg %p262
        $region123: #{dilated_residual_layer.1} parent=108 // pred_check_branch
          %889 = sbr.rel (%p887) target = $region125
        $region124: #{dilated_residual_layer.1} parent=108 // pred_region
          %s890 = smul.u32 2, %s27
          %s892 = ssub.s32 512, 512
          %893 = vsyncadd %s883, %s892
          %s894 = smul.addr %s26, 8
          %s895 = sadd.s32 %s890, %s894
          %s896 = smul.addr %s895, 128
          %s897 = scalar_lea.hbm %s8, %s896
          %s898 = sshll.u32 %s886, 4
          %s899 = int_to_ptr.vmem [resolvable:$true] %s898
          %904 = dma.vmem_to_hbm [thread:$0]  %s899, 512, %s897, %s883, 256, 512, 16
        $region125: #{dilated_residual_layer.1} parent=108 // pred_fallthru
          _
      $region109: #{dilated_residual_layer.1} parent=5 // pred_fallthru
        _
      %p905 = scmp.le.s32.totalorder 2, %s17
      // Predicated region
      $region126: #{dilated_residual_layer.1} parent=5 // pred_check
        %p906 = pneg %p905
      $region127: #{dilated_residual_layer.1} parent=5 // pred_check_branch
        %908 = sbr.rel (%p906) target = $region129
      $region128: #{dilated_residual_layer.1} parent=5 // pred_region
        %s909 = ssub.s32 %s17, 2
        // Predicated region
        $region130: #{dilated_residual_layer.1} parent=128 // pred_check
          %p910 = pneg %p268
        $region131: #{dilated_residual_layer.1} parent=128 // pred_check_branch
          %912 = sbr.rel (%p910) target = $region133
        $region132: #{dilated_residual_layer.1} parent=128 // pred_region
          %s913 = sand.u32 %s253, 1
          %s914 = scalar_lea.sflag [#allocation7], %s913
          %s915 = sand.u32 %s253, 1
          %s916 = smul.addr %s915, 32
          %s917 = scalar_lea.vmem [#allocation6], %s916
          %918 = dma.done %s914, 512
        $region133: #{dilated_residual_layer.1} parent=128 // pred_fallthru
          _
      $region129: #{dilated_residual_layer.1} parent=5 // pred_fallthru
        _
    $region6: #{dilated_residual_layer.1} parent=1 // loop_footer
      %s21 = sadd.s32 1, %s17
    $region7: #{dilated_residual_layer.1} parent=1 // loop_footer_branch
      %16 = sbr.rel target = $region3
    $region8: #{dilated_residual_layer.1} parent=1 // loop_exit
      _
    %919 = vsyncpa [#allocation7], 1
    %s920 = scalar_lea.sflag [#allocation7], 1
    %921 = vsyncpa %s920, 1

</llo_original>
